<compile_context>
chip_gen: v7x
topology: tpu7x:2x2x1
jax: 0.10.0
libtpu: 0.0.40
codegen_flags: <defaults>
</compile_context>

<pallas_src>
import functools

import jax
import jax.numpy as jnp
from jax import lax
from jax.experimental import pallas as pl
from jax.experimental.pallas import tpu as pltpu


# --------------------------------------------------------------------------- #
# helpers
# --------------------------------------------------------------------------- #
def _largest_divisor(n, cap):
    """Largest divisor of n that is <= cap (always >= 1)."""
    cap = max(1, min(n, cap))
    for d in range(cap, 0, -1):
        if n % d == 0:
            return d
    return 1


def _bn_affine(mean, var, gamma, beta, eps=1e-5):
    """Fold training-mode BatchNorm (batch stats, biased var) into scale/bias."""
    scale = gamma * lax.rsqrt(var + eps)
    return scale, beta - mean * scale


# --------------------------------------------------------------------------- #
# Kernel 1: one-pass per-channel batch statistics (sum and sum of squares)
# --------------------------------------------------------------------------- #
def _stats_kernel(x_ref, sum_ref, sq_ref):
    @pl.when(pl.program_id(0) == 0)
    def _():
        sum_ref[...] = jnp.zeros_like(sum_ref)
        sq_ref[...] = jnp.zeros_like(sq_ref)

    x = x_ref[...].astype(jnp.float32)             # (TR, W, C)
    tr, w, c = x.shape
    x2 = x.reshape(tr * w, c)
    sum_ref[...] += jnp.sum(x2, axis=0, keepdims=True)
    sq_ref[...] += jnp.sum(x2 * x2, axis=0, keepdims=True)


def bn_batch_stats_nhwc(x):
    """Per-channel mean / biased variance over (B, H, W) in a single HBM pass."""
    B, H, W, C = x.shape
    R = B * H
    x3 = x.reshape(R, W, C)                        # free view
    tr = _largest_divisor(R, max(1, (1 << 18) // max(W * C, 1)))
    s, sq = pl.pallas_call(
        _stats_kernel,
        out_shape=(jax.ShapeDtypeStruct((1, C), jnp.float32),
                   jax.ShapeDtypeStruct((1, C), jnp.float32)),
        grid=(R // tr,),
        in_specs=[pl.BlockSpec((tr, W, C), lambda i: (i, 0, 0))],
        out_specs=(pl.BlockSpec((1, C), lambda i: (0, 0)),
                   pl.BlockSpec((1, C), lambda i: (0, 0))),
        compiler_params=pltpu.CompilerParams(
            dimension_semantics=("arbitrary",)),   # running accumulation
    )(x3)
    n = float(B * H * W)
    mean = s[0] / n
    var = sq[0] / n - mean * mean
    return mean, var


# --------------------------------------------------------------------------- #
# Shared conv building block: BN+ReLU fused into the tap reads, taps unrolled
# in-kernel (no im2col), MXU accumulation in f32.  One grid step == one
# zero-padded image resident in VMEM.
# --------------------------------------------------------------------------- #
def _conv_taps(x_ref, s_ref, b_ref, w_ref, *, Ho, Wo, KH, KW,
               pad_h, pad_w, Cin, Cout):
    scale = s_ref[...]                             # (1, 1, Cin)
    shift = b_ref[...]
    acc = jnp.zeros((Ho * Wo, Cout), jnp.float32)
    for kh in range(KH):
        for kw in range(KW):
            a = x_ref[0, kh:kh + Ho, kw:kw + Wo, :].astype(jnp.float32)
            a = jnp.maximum(a * scale + shift, 0.0)            # BN + ReLU
            if kh != pad_h or kw != pad_w:
                # Zero contributions that came from the zero-padded border
                # (relu(0*scale + shift) is not 0 in general).
                rid = lax.broadcasted_iota(jnp.int32, (Ho, Wo, 1), 0)
                cid = lax.broadcasted_iota(jnp.int32, (Ho, Wo, 1), 1)
                valid = ((rid + kh >= pad_h) & (rid + kh < pad_h + Ho) &
                         (cid + kw >= pad_w) & (cid + kw < pad_w + Wo))
                a = jnp.where(valid, a, 0.0)
            acc += jnp.dot(a.reshape(Ho * Wo, Cin), w_ref[kh * KW + kw],
                           preferred_element_type=jnp.float32)
    return acc


# --------------------------------------------------------------------------- #
# Kernel 2: BN1+ReLU -> Conv3x3 -> 2x NN upsample, plus BN2 statistics
# --------------------------------------------------------------------------- #
def _conv1_kernel(x_ref, s_ref, b_ref, w_ref, cb_ref,
                  o_ref, sum_ref, sq_ref, *,
                  Ho, Wo, KH, KW, pad_h, pad_w, Cin, Cout):
    @pl.when(pl.program_id(0) == 0)
    def _():
        sum_ref[...] = jnp.zeros_like(sum_ref)
        sq_ref[...] = jnp.zeros_like(sq_ref)

    acc = _conv_taps(x_ref, s_ref, b_ref, w_ref, Ho=Ho, Wo=Wo, KH=KH, KW=KW,
                     pad_h=pad_h, pad_w=pad_w, Cin=Cin, Cout=Cout)
    h = acc + cb_ref[...]                          # conv output (Ho*Wo, Cout), f32

    # BatchNorm2 statistics folded into this kernel's epilogue (accumulated
    # across the batch grid axis): no extra HBM pass over the conv output.
    sum_ref[...] += jnp.sum(h, axis=0, keepdims=True)
    sq_ref[...] += jnp.sum(h * h, axis=0, keepdims=True)

    # cat([.]*4, channel) + DepthToSpace(2) == 2x nearest-neighbour upsample:
    # duplicate the channel chunk in-register (width duplication) and store the
    # row block twice (height duplication).  The (B*Ho, 2, Wo, 2*Cout) output
    # is a free view of the upsampled NHWC tensor, so no separate upsample
    # kernel or HBM round trip of the small conv output is needed.
    d = jnp.concatenate([h, h], axis=-1).reshape(Ho, Wo, 2 * Cout)
    d = d.astype(o_ref.dtype)
    o_ref[:, 0, :, :] = d
    o_ref[:, 1, :, :] = d


def conv3x3_bn_relu_upsample_stats(x, scale, bias, w_hwio, conv_b):
    """relu(bn(x)) -> Conv(k x k, 'same') -> 2x NN upsample in one Pallas call.

    Also returns the per-channel sum / sum-of-squares of the (pre-upsample)
    conv output so the following BatchNorm needs no extra statistics pass.
    """
    B, H, W, Cin = x.shape
    KH, KW, _, Cout = w_hwio.shape
    ph, pw = (KH - 1) // 2, (KW - 1) // 2
    xp = jnp.pad(x, ((0, 0), (ph, ph), (pw, pw), (0, 0)))
    kern = functools.partial(_conv1_kernel, Ho=H, Wo=W, KH=KH, KW=KW,
                             pad_h=ph, pad_w=pw, Cin=Cin, Cout=Cout)
    up, s, sq = pl.pallas_call(
        kern,
        out_shape=(jax.ShapeDtypeStruct((B * H, 2, W, 2 * Cout), x.dtype),
                   jax.ShapeDtypeStruct((1, Cout), jnp.float32),
                   jax.ShapeDtypeStruct((1, Cout), jnp.float32)),
        grid=(B,),
        in_specs=[
            pl.BlockSpec((1, H + 2 * ph, W + 2 * pw, Cin), lambda b: (b, 0, 0, 0)),
            pl.BlockSpec((1, 1, Cin), lambda b: (0, 0, 0)),
            pl.BlockSpec((1, 1, Cin), lambda b: (0, 0, 0)),
            pl.BlockSpec((KH * KW, Cin, Cout), lambda b: (0, 0, 0)),
            pl.BlockSpec((1, Cout), lambda b: (0, 0)),
        ],
        out_specs=(
            pl.BlockSpec((H, 2, W, 2 * Cout), lambda b: (b, 0, 0, 0)),
            pl.BlockSpec((1, Cout), lambda b: (0, 0)),
            pl.BlockSpec((1, Cout), lambda b: (0, 0)),
        ),
        compiler_params=pltpu.CompilerParams(
            dimension_semantics=("arbitrary",)),   # stats accumulate over batch
    )(xp, scale.reshape(1, 1, Cin), bias.reshape(1, 1, Cin),
      w_hwio.reshape(KH * KW, Cin, Cout), conv_b.reshape(1, Cout))
    up_nhwc = up.reshape(B, H, 2, W, 2, Cout).reshape(B, 2 * H, 2 * W, Cout)
    return up_nhwc, s[0], sq[0]


# --------------------------------------------------------------------------- #
# Kernel 3: BN2+ReLU -> Conv3x3 on the upsampled tensor (residual branch)
# --------------------------------------------------------------------------- #
def _conv2_kernel(x_ref, s_ref, b_ref, w_ref, cb_ref, o_ref, *,
                  Ho, Wo, KH, KW, pad_h, pad_w, Cin, Cout):
    acc = _conv_taps(x_ref, s_ref, b_ref, w_ref, Ho=Ho, Wo=Wo, KH=KH, KW=KW,
                     pad_h=pad_h, pad_w=pad_w, Cin=Cin, Cout=Cout)
    out = (acc + cb_ref[...]).reshape(Ho, Wo, Cout).astype(o_ref.dtype)
    o_ref[0, :, :, :] = out


def conv3x3_bn_relu(x, scale, bias, w_hwio, conv_b):
    """relu(bn(x)) -> Conv(k x k, 'same'), one Pallas kernel, grid over batch."""
    B, H, W, Cin = x.shape
    KH, KW, _, Cout = w_hwio.shape
    ph, pw = (KH - 1) // 2, (KW - 1) // 2
    # TODO(synk): this spatial zero-pad is still one XLA pass over the largest
    # intermediate; writing the padded layout directly from the producing
    # kernel would remove it.
    xp = jnp.pad(x, ((0, 0), (ph, ph), (pw, pw), (0, 0)))
    kern = functools.partial(_conv2_kernel, Ho=H, Wo=W, KH=KH, KW=KW,
                             pad_h=ph, pad_w=pw, Cin=Cin, Cout=Cout)
    out = pl.pallas_call(
        kern,
        out_shape=jax.ShapeDtypeStruct((B, H, W, Cout), x.dtype),
        grid=(B,),
        in_specs=[
            pl.BlockSpec((1, H + 2 * ph, W + 2 * pw, Cin), lambda b: (b, 0, 0, 0)),
            pl.BlockSpec((1, 1, Cin), lambda b: (0, 0, 0)),
            pl.BlockSpec((1, 1, Cin), lambda b: (0, 0, 0)),
            pl.BlockSpec((KH * KW, Cin, Cout), lambda b: (0, 0, 0)),
            pl.BlockSpec((1, Cout), lambda b: (0, 0)),
        ],
        out_specs=pl.BlockSpec((1, H, W, Cout), lambda b: (b, 0, 0, 0)),
        compiler_params=pltpu.CompilerParams(
            dimension_semantics=("parallel",)),
    )(xp, scale.reshape(1, 1, Cin), bias.reshape(1, 1, Cin),
      w_hwio.reshape(KH * KW, Cin, Cout), conv_b.reshape(1, Cout))
    return out


# --------------------------------------------------------------------------- #
# Kernel 4: shortcut 1x1 conv (commuted before the upsample) + 2x replication
#           + residual add, all fused
# --------------------------------------------------------------------------- #
def _shortcut_kernel(x_ref, w_ref, b_ref, r_ref, o_ref):
    tr, w, cin = x_ref.shape
    cout = w_ref.shape[-1]
    # 1x1 conv on the small (pre-upsample) input (4x fewer FLOPs / HBM bytes).
    s = jnp.dot(x_ref[...].reshape(tr * w, cin).astype(jnp.float32), w_ref[...],
                preferred_element_type=jnp.float32) + b_ref[...]
    s = s.reshape(tr, 1, w, cout)
    s = jnp.concatenate([s, s], axis=-1)           # width duplication
    # Height duplication via broadcast + fused residual add; one full-block store.
    o_ref[...] = (r_ref[...].astype(jnp.float32) + s).astype(o_ref.dtype)


def shortcut_upsample_add(x, w_sc, b_sc, r):
    """UpsampleConv2D(1x1, pad=0)(x) + r.

    Conv1x1(upsample2x(x)) == upsample2x(Conv1x1(x)) for a stride-1, pad-0 1x1
    conv on nearest-neighbour-replicated input, so the conv runs on the small
    x and the replication + residual add are fused into one kernel.  The
    4x-inflated shortcut intermediate never exists.
    """
    B, H, W, Cin = x.shape
    Cout = w_sc.shape[-1]
    R = B * H
    x3 = x.reshape(R, W, Cin)                      # free view
    r4 = r.reshape(R, 2, W, 2 * Cout)              # free view of NHWC (B,2H,2W,Cout)
    per_row = W * Cin + 2 * (2 * W * 2 * Cout)
    tr = _largest_divisor(R, max(1, (1 << 18) // max(per_row, 1)))
    y = pl.pallas_call(
        _shortcut_kernel,
        out_shape=jax.ShapeDtypeStruct((R, 2, W, 2 * Cout), x.dtype),
        grid=(R // tr,),
        in_specs=[
            pl.BlockSpec((tr, W, Cin), lambda i: (i, 0, 0)),
            pl.BlockSpec((Cin, Cout), lambda i: (0, 0)),
            pl.BlockSpec((1, Cout), lambda i: (0, 0)),
            pl.BlockSpec((tr, 2, W, 2 * Cout), lambda i: (i, 0, 0, 0)),
        ],
        out_specs=pl.BlockSpec((tr, 2, W, 2 * Cout), lambda i: (i, 0, 0, 0)),
        compiler_params=pltpu.CompilerParams(
            dimension_semantics=("parallel",)),
    )(x3, w_sc.reshape(Cin, Cout), b_sc.reshape(1, Cout), r4)
    return y.reshape(B, 2 * H, 2 * W, Cout)


# --------------------------------------------------------------------------- #
# ResBlockUp forward (NCHW in / NCHW out, NHWC inside)
# --------------------------------------------------------------------------- #
def resblock_up_forward(x_nchw, params):
    # Single layout change at each module boundary; everything inside is NHWC.
    x = jnp.transpose(x_nchw, (0, 2, 3, 1))

    # BN1 statistics: one Pallas pass (sum + sum of squares).
    mean1, var1 = bn_batch_stats_nhwc(x)
    s1, b1 = _bn_affine(mean1, var1, params["bn1_gamma"], params["bn1_beta"])

    # BN1+ReLU -> Conv3x3 -> 2x NN upsample (fused); BN2 stats fall out free.
    h_up, sum2, sq2 = conv3x3_bn_relu_upsample_stats(
        x, s1, b1, params["conv1_w"], params["conv1_b"])

    B, H, W, _ = x.shape
    n = float(B * H * W)
    mean2 = sum2 / n
    var2 = sq2 / n - mean2 * mean2
    s2, b2 = _bn_affine(mean2, var2, params["bn2_gamma"], params["bn2_beta"])

    # BN2+ReLU -> Conv3x3 on the upsampled tensor (per-channel BN/ReLU commute
    # with the channel-preserving replication, so fusing them here is exact).
    r = conv3x3_bn_relu(h_up, s2, b2, params["up_w"], params["up_b"])

    # Shortcut: 1x1 conv commuted before the upsample; replication + add fused.
    y = shortcut_upsample_add(x, params["sc_w"], params["sc_b"], r)

    return jnp.transpose(y, (0, 3, 1, 2))


# --------------------------------------------------------------------------- #
# pure-JAX reference mirroring the PyTorch module op-by-op
# --------------------------------------------------------------------------- #
def _depth_to_space_ref(x_nchw, bs):
    B, C, H, W = x_nchw.shape
    s_depth = C // (bs * bs)
    t = x_nchw.reshape(B, bs, bs, s_depth, H, W)
    t = jnp.transpose(t, (0, 3, 4, 1, 5, 2))
    return t.reshape(B, s_depth, H * bs, W * bs)


def _bn_relu_ref(x, gamma, beta, eps=1e-5):
    mean = jnp.mean(x, axis=(0, 2, 3), keepdims=True)
    var = jnp.var(x, axis=(0, 2, 3), keepdims=True)
    xhat = (x - mean) / jnp.sqrt(var + eps)
    return jnp.maximum(xhat * gamma.reshape(1, -1, 1, 1)
                       + beta.reshape(1, -1, 1, 1), 0.0)


def _conv_ref(x, w_hwio, b, padding):
    w_oihw = jnp.transpose(w_hwio, (3, 2, 0, 1))
    y = lax.conv_general_dilated(
        x, w_oihw, window_strides=(1, 1),
        padding=[(padding[0], padding[0]), (padding[1], padding[1])],
        dimension_numbers=("NCHW", "OIHW", "NCHW"),
        precision=lax.Precision.HIGHEST)
    return y + b.reshape(1, -1, 1, 1)


def _upsample_conv_ref(x, w, b, padding):
    x0 = jnp.concatenate([x] * 4, axis=1)
    x1 = _depth_to_space_ref(x0, 2)
    return _conv_ref(x1, w, b, padding)


def resblock_up_ref(x, params, filter_size):
    pad = tuple((k - 1) // 2 for k in filter_size)
    h = _bn_relu_ref(x, params["bn1_gamma"], params["bn1_beta"])
    h = _conv_ref(h, params["conv1_w"], params["conv1_b"], pad)
    h = _bn_relu_ref(h, params["bn2_gamma"], params["bn2_beta"])
    r = _upsample_conv_ref(h, params["up_w"], params["up_b"], pad)
    s = _upsample_conv_ref(x, params["sc_w"], params["sc_b"], (0, 0))
    return r + s


# --------------------------------------------------------------------------- #
if __name__ == "__main__":
    B, C, H, W = 2, 4, 16, 16
    n_filters = 8
    filter_size = (3, 3)

    key = jax.random.PRNGKey(0)
    keys = jax.random.split(key, 10)
    x = jax.random.normal(keys[0], (B, C, H, W), dtype=jnp.float32)

    def cinit(k, kh, kw, cin, cout):
        fan_in = kh * kw * cin
        return (jax.random.normal(k, (kh, kw, cin, cout), jnp.float32)
                / jnp.sqrt(float(fan_in)))

    params = {
        "bn1_gamma": 1.0 + 0.1 * jax.random.normal(keys[1], (C,), jnp.float32),
        "bn1_beta": 0.1 * jax.random.normal(keys[2], (C,), jnp.float32),
        "conv1_w": cinit(keys[3], filter_size[0], filter_size[1], C, C),
        "conv1_b": 0.1 * jax.random.normal(keys[4], (C,), jnp.float32),
        "bn2_gamma": 1.0 + 0.1 * jax.random.normal(keys[5], (C,), jnp.float32),
        "bn2_beta": 0.1 * jax.random.normal(keys[6], (C,), jnp.float32),
        "up_w": cinit(keys[7], filter_size[0], filter_size[1], C, n_filters),
        "up_b": 0.1 * jax.random.normal(keys[8], (n_filters,), jnp.float32),
        "sc_w": cinit(keys[9], 1, 1, C, n_filters),
        "sc_b": jnp.zeros((n_filters,), jnp.float32),
    }

    # Quick check of the one-pass Pallas BN statistics kernel.
    x_nhwc = jnp.transpose(x, (0, 2, 3, 1))
    m, v = jax.jit(bn_batch_stats_nhwc)(x_nhwc)
    m, v = jax.block_until_ready((m, v))
    assert jnp.allclose(m, jnp.mean(x_nhwc, axis=(0, 1, 2)), atol=1e-4)
    assert jnp.allclose(v, jnp.var(x_nhwc, axis=(0, 1, 2)), atol=1e-4)

    fwd = jax.jit(resblock_up_forward)
    out = jax.block_until_ready(fwd(x, params))
    ref = jax.block_until_ready(resblock_up_ref(x, params, filter_size))

    assert out.shape == (B, n_filters, 2 * H, 2 * W), out.shape
    assert out.dtype == x.dtype
    err = float(jnp.max(jnp.abs(out - ref)))
    assert err < 5e-2, f"ResBlockUp Pallas forward mismatch vs reference: {err}"

    print("KERNEL_OK")
</pallas_src>

<mosaic_0001>
module attributes {stable_mosaic.version = 11 : i64} {
  func.func @_stats_kernel(%arg0: i32, %arg1: memref<32x16x4xf32, #tpu.memory_space<vmem>>, %arg2: memref<1x4xf32, #tpu.memory_space<vmem>>, %arg3: memref<1x4xf32, #tpu.memory_space<vmem>>) attributes {dimension_semantics = [#tpu.dimension_semantics<arbitrary>], iteration_bounds = array<i64: 1>, scalar_prefetch = 0 : i64, scratch_operands = 0 : i64, tpu.core_type = #tpu.core_type<tc>, window_params = [{transform_indices = @transform_0, window_bounds = array<i64: 32, 16, 4>}, {pipeline_mode = #tpu.pipeline_mode<synchronous>, transform_indices = @transform_1, window_bounds = array<i64: 1, 4>}, {pipeline_mode = #tpu.pipeline_mode<synchronous>, transform_indices = @transform_2, window_bounds = array<i64: 1, 4>}]} {
    %c0_i32 = arith.constant 0 : i32
    %0 = arith.cmpi eq, %arg0, %c0_i32 : i32
    %1 = arith.extui %0 : i1 to i32
    %c0_i32_0 = arith.constant 0 : i32
    %2 = arith.cmpi ne, %1, %c0_i32_0 : i32
    scf.if %2 {
      %cst_12 = arith.constant 0.000000e+00 : f32
      %16 = vector.broadcast %cst_12 : f32 to vector<1x4xf32>
      %c0_13 = arith.constant 0 : index
      %c0_14 = arith.constant 0 : index
      %17 = vector.load %arg2[%c0_13, %c0_14] : memref<1x4xf32, #tpu.memory_space<vmem>>, vector<1x4xf32>
      tpu.vector_store %arg2[%c0_13, %c0_14], %16 {strides = array<i32>} : memref<1x4xf32, #tpu.memory_space<vmem>>, vector<1x4xf32>,
      %cst_15 = arith.constant 0.000000e+00 : f32
      %18 = vector.broadcast %cst_15 : f32 to vector<1x4xf32>
      %c0_16 = arith.constant 0 : index
      %c0_17 = arith.constant 0 : index
      %19 = vector.load %arg3[%c0_16, %c0_17] : memref<1x4xf32, #tpu.memory_space<vmem>>, vector<1x4xf32>
      tpu.vector_store %arg3[%c0_16, %c0_17], %18 {strides = array<i32>} : memref<1x4xf32, #tpu.memory_space<vmem>>, vector<1x4xf32>,
    } else {
    }
    %c0 = arith.constant 0 : index
    %c0_1 = arith.constant 0 : index
    %c0_2 = arith.constant 0 : index
    %3 = vector.load %arg1[%c0, %c0_1, %c0_2] : memref<32x16x4xf32, #tpu.memory_space<vmem>>, vector<32x16x4xf32>
    %4 = vector.shape_cast %3 : vector<32x16x4xf32> to vector<512x4xf32>
    %c0_3 = arith.constant 0 : index
    %c0_4 = arith.constant 0 : index
    %5 = vector.load %arg2[%c0_3, %c0_4] : memref<1x4xf32, #tpu.memory_space<vmem>>, vector<1x4xf32>
    %cst = arith.constant dense<0.000000e+00> : vector<4xf32>
    %6 = vector.multi_reduction <add>, %4, %cst [0] : vector<512x4xf32> to vector<4xf32>
    %7 = vector.shape_cast %6 : vector<4xf32> to vector<1x4xf32>
    %8 = arith.addf %5, %7 : vector<1x4xf32>
    %c0_5 = arith.constant 0 : index
    %c0_6 = arith.constant 0 : index
    %9 = vector.load %arg2[%c0_5, %c0_6] : memref<1x4xf32, #tpu.memory_space<vmem>>, vector<1x4xf32>
    tpu.vector_store %arg2[%c0_5, %c0_6], %8 {strides = array<i32>} : memref<1x4xf32, #tpu.memory_space<vmem>>, vector<1x4xf32>,
    %c0_7 = arith.constant 0 : index
    %c0_8 = arith.constant 0 : index
    %10 = vector.load %arg3[%c0_7, %c0_8] : memref<1x4xf32, #tpu.memory_space<vmem>>, vector<1x4xf32>
    %11 = arith.mulf %4, %4 : vector<512x4xf32>
    %cst_9 = arith.constant dense<0.000000e+00> : vector<4xf32>
    %12 = vector.multi_reduction <add>, %11, %cst_9 [0] : vector<512x4xf32> to vector<4xf32>
    %13 = vector.shape_cast %12 : vector<4xf32> to vector<1x4xf32>
    %14 = arith.addf %10, %13 : vector<1x4xf32>
    %c0_10 = arith.constant 0 : index
    %c0_11 = arith.constant 0 : index
    %15 = vector.load %arg3[%c0_10, %c0_11] : memref<1x4xf32, #tpu.memory_space<vmem>>, vector<1x4xf32>
    tpu.vector_store %arg3[%c0_10, %c0_11], %14 {strides = array<i32>} : memref<1x4xf32, #tpu.memory_space<vmem>>, vector<1x4xf32>,
    return
  }
  func.func @transform_0(%arg0: i32) -> (i32, i32, i32) {
    %c0_i32 = arith.constant 0 : i32
    %c0_i32_0 = arith.constant 0 : i32
    %c0_i32_1 = arith.constant 0 : i32
    return %arg0, %c0_i32, %c0_i32_0 : i32, i32, i32
  }
  func.func @transform_1(%arg0: i32) -> (i32, i32) {
    %c0_i32 = arith.constant 0 : i32
    %c0_i32_0 = arith.constant 0 : i32
    %c0_i32_1 = arith.constant 0 : i32
    return %c0_i32, %c0_i32_0 : i32, i32
  }
  func.func @transform_2(%arg0: i32) -> (i32, i32) {
    %c0_i32 = arith.constant 0 : i32
    %c0_i32_0 = arith.constant 0 : i32
    %c0_i32_1 = arith.constant 0 : i32
    return %c0_i32, %c0_i32_0 : i32, i32
  }
}

</mosaic_0001>

<llo_original>
// kernel: bn_batch_stats_nhwc.1
$region0: #{bn_batch_stats_nhwc.1}
  #allocation0 [shape = 'u32[]', space=smem, size = 0x4, offset = 0x4, fixed_abs, tag = 'smem constant byte address 0x4 - core index']
  #allocation1 [shape = 'u32[144,128]{1,0:T(1,128)}', space=vmem, size = 0x12000, scoped, tag = 'internal scratch']
  %s0 = inlined_call_operand.vmem [shape: f32[32,16,4], index: 0, kind: input, shape index: {}]
  %s1 = inlined_call_operand.vmem [shape: f32[1,4], index: 1, kind: output, shape index: {0}]
  %s2 = inlined_call_operand.vmem [shape: f32[1,4], index: 2, kind: output, shape index: {1}]
  %3 = xla_tuple %s1, %s2
  %s4 = sld [smem:[#allocation0]]
  $region26: #{bn_batch_stats_nhwc.1} parent=0
    _
  %s6 = ssub.s32 1, %s4
  %s7 = scalar_select 0, %s6, %s4
  // Predicated region
  $region2: #{bn_batch_stats_nhwc.1} parent=0 // pred_check
    _
  $region3: #{bn_batch_stats_nhwc.1} parent=0 // pred_check_branch
    %9 = sbr.rel (0) target = $region5
  $region4: #{bn_batch_stats_nhwc.1} parent=0 // pred_region
    _
  $region5: #{bn_batch_stats_nhwc.1} parent=0 // pred_fallthru
    _
  %p10 = scmp.eq.s32.totalorder 0, 0
  // Predicated region
  $region6: #{bn_batch_stats_nhwc.1} parent=0 // pred_check
    %p11 = pneg %p10
  $region7: #{bn_batch_stats_nhwc.1} parent=0 // pred_check_branch
    %13 = sbr.rel (%p11) target = $region9
  $region8: #{bn_batch_stats_nhwc.1} parent=0 // pred_region
    %vm14 = vcmask 24576
    %15 = vst.msk [vmem:[%s1] sm:$0x1] %vm14, 0.0
    %16 = vst.msk [vmem:[%s2] sm:$0x1] %vm14, 0.0
  $region9: #{bn_batch_stats_nhwc.1} parent=0 // pred_fallthru
    _
  %v17 = vld [vmem:[%s0] sm:$0xff]
  %v18 = vld [vmem:[%s0 + $0x8] sm:$0xff]
  %v19 = vld [vmem:[%s0 + $0x10] sm:$0xff]
  %v20 = vld [vmem:[%s0 + $0x18] sm:$0xff]
  %v21 = vld [vmem:[%s0 + $0x20] sm:$0xff]
  %v22 = vld [vmem:[%s0 + $0x28] sm:$0xff]
  %v23 = vld [vmem:[%s0 + $0x30] sm:$0xff]
  %v24 = vld [vmem:[%s0 + $0x38] sm:$0xff]
  %v25 = vld [vmem:[%s0 + $0x40] sm:$0xff]
  %v26 = vld [vmem:[%s0 + $0x48] sm:$0xff]
  %v27 = vld [vmem:[%s0 + $0x50] sm:$0xff]
  %v28 = vld [vmem:[%s0 + $0x58] sm:$0xff]
  %v29 = vld [vmem:[%s0 + $0x60] sm:$0xff]
  %v30 = vld [vmem:[%s0 + $0x68] sm:$0xff]
  %v31 = vld [vmem:[%s0 + $0x70] sm:$0xff]
  %v32 = vld [vmem:[%s0 + $0x78] sm:$0xff]
  %v33 = vld [vmem:[%s0 + $0x80] sm:$0xff]
  %v34 = vld [vmem:[%s0 + $0x88] sm:$0xff]
  %v35 = vld [vmem:[%s0 + $0x90] sm:$0xff]
  %v36 = vld [vmem:[%s0 + $0x98] sm:$0xff]
  %v37 = vld [vmem:[%s0 + $0xa0] sm:$0xff]
  %v38 = vld [vmem:[%s0 + $0xa8] sm:$0xff]
  %v39 = vld [vmem:[%s0 + $0xb0] sm:$0xff]
  %v40 = vld [vmem:[%s0 + $0xb8] sm:$0xff]
  %v41 = vld [vmem:[%s0 + $0xc0] sm:$0xff]
  %v42 = vld [vmem:[%s0 + $0xc8] sm:$0xff]
  %v43 = vld [vmem:[%s0 + $0xd0] sm:$0xff]
  %v44 = vld [vmem:[%s0 + $0xd8] sm:$0xff]
  %v45 = vld [vmem:[%s0 + $0xe0] sm:$0xff]
  %v46 = vld [vmem:[%s0 + $0xe8] sm:$0xff]
  %v47 = vld [vmem:[%s0 + $0xf0] sm:$0xff]
  %v48 = vld [vmem:[%s0 + $0xf8] sm:$0xff]
  %v49 = vld [vmem:[%s0 + $0x100] sm:$0xff]
  %v50 = vld [vmem:[%s0 + $0x108] sm:$0xff]
  %v51 = vld [vmem:[%s0 + $0x110] sm:$0xff]
  %v52 = vld [vmem:[%s0 + $0x118] sm:$0xff]
  %v53 = vld [vmem:[%s0 + $0x120] sm:$0xff]
  %v54 = vld [vmem:[%s0 + $0x128] sm:$0xff]
  %v55 = vld [vmem:[%s0 + $0x130] sm:$0xff]
  %v56 = vld [vmem:[%s0 + $0x138] sm:$0xff]
  %v57 = vld [vmem:[%s0 + $0x140] sm:$0xff]
  %v58 = vld [vmem:[%s0 + $0x148] sm:$0xff]
  %v59 = vld [vmem:[%s0 + $0x150] sm:$0xff]
  %v60 = vld [vmem:[%s0 + $0x158] sm:$0xff]
  %v61 = vld [vmem:[%s0 + $0x160] sm:$0xff]
  %v62 = vld [vmem:[%s0 + $0x168] sm:$0xff]
  %v63 = vld [vmem:[%s0 + $0x170] sm:$0xff]
  %v64 = vld [vmem:[%s0 + $0x178] sm:$0xff]
  %v65 = vld [vmem:[%s0 + $0x180] sm:$0xff]
  %v66 = vld [vmem:[%s0 + $0x188] sm:$0xff]
  %v67 = vld [vmem:[%s0 + $0x190] sm:$0xff]
  %v68 = vld [vmem:[%s0 + $0x198] sm:$0xff]
  %v69 = vld [vmem:[%s0 + $0x1a0] sm:$0xff]
  %v70 = vld [vmem:[%s0 + $0x1a8] sm:$0xff]
  %v71 = vld [vmem:[%s0 + $0x1b0] sm:$0xff]
  %v72 = vld [vmem:[%s0 + $0x1b8] sm:$0xff]
  %v73 = vld [vmem:[%s0 + $0x1c0] sm:$0xff]
  %v74 = vld [vmem:[%s0 + $0x1c8] sm:$0xff]
  %v75 = vld [vmem:[%s0 + $0x1d0] sm:$0xff]
  %v76 = vld [vmem:[%s0 + $0x1d8] sm:$0xff]
  %v77 = vld [vmem:[%s0 + $0x1e0] sm:$0xff]
  %v78 = vld [vmem:[%s0 + $0x1e8] sm:$0xff]
  %v79 = vld [vmem:[%s0 + $0x1f0] sm:$0xff]
  %v80 = vld [vmem:[%s0 + $0x1f8] sm:$0xff]
  %v81 = vld [vmem:[%s1] sm:$0x1]
  %vm82 = vcmask 31744
  %v83 = vsel %vm82, %v17, 0.0
  %v84 = vsel %vm82, %v18, 0.0
  %v85 = vadd.f32 %v83, %v84
  %v86 = vsel %vm82, %v19, 0.0
  %v87 = vadd.f32 %v85, %v86
  %v88 = vsel %vm82, %v20, 0.0
  %v89 = vadd.f32 %v87, %v88
  %v90 = vsel %vm82, %v21, 0.0
  %v91 = vadd.f32 %v89, %v90
  %v92 = vsel %vm82, %v22, 0.0
  %v93 = vadd.f32 %v91, %v92
  %v94 = vsel %vm82, %v23, 0.0
  %v95 = vadd.f32 %v93, %v94
  %v96 = vsel %vm82, %v24, 0.0
  %v97 = vadd.f32 %v95, %v96
  %v98 = vsel %vm82, %v25, 0.0
  %v99 = vadd.f32 %v97, %v98
  %v100 = vsel %vm82, %v26, 0.0
  %v101 = vadd.f32 %v99, %v100
  %v102 = vsel %vm82, %v27, 0.0
  %v103 = vadd.f32 %v101, %v102
  %v104 = vsel %vm82, %v28, 0.0
  %v105 = vadd.f32 %v103, %v104
  %v106 = vsel %vm82, %v29, 0.0
  %v107 = vadd.f32 %v105, %v106
  %v108 = vsel %vm82, %v30, 0.0
  %v109 = vadd.f32 %v107, %v108
  %v110 = vsel %vm82, %v31, 0.0
  %v111 = vadd.f32 %v109, %v110
  %v112 = vsel %vm82, %v32, 0.0
  %v113 = vadd.f32 %v111, %v112
  %v114 = vsel %vm82, %v33, 0.0
  %v115 = vadd.f32 %v113, %v114
  %v116 = vsel %vm82, %v34, 0.0
  %v117 = vadd.f32 %v115, %v116
  %v118 = vsel %vm82, %v35, 0.0
  %v119 = vadd.f32 %v117, %v118
  %v120 = vsel %vm82, %v36, 0.0
  %v121 = vadd.f32 %v119, %v120
  %v122 = vsel %vm82, %v37, 0.0
  %v123 = vadd.f32 %v121, %v122
  %v124 = vsel %vm82, %v38, 0.0
  %v125 = vadd.f32 %v123, %v124
  %v126 = vsel %vm82, %v39, 0.0
  %v127 = vadd.f32 %v125, %v126
  %v128 = vsel %vm82, %v40, 0.0
  %v129 = vadd.f32 %v127, %v128
  %v130 = vsel %vm82, %v41, 0.0
  %v131 = vadd.f32 %v129, %v130
  %v132 = vsel %vm82, %v42, 0.0
  %v133 = vadd.f32 %v131, %v132
  %v134 = vsel %vm82, %v43, 0.0
  %v135 = vadd.f32 %v133, %v134
  %v136 = vsel %vm82, %v44, 0.0
  %v137 = vadd.f32 %v135, %v136
  %v138 = vsel %vm82, %v45, 0.0
  %v139 = vadd.f32 %v137, %v138
  %v140 = vsel %vm82, %v46, 0.0
  %v141 = vadd.f32 %v139, %v140
  %v142 = vsel %vm82, %v47, 0.0
  %v143 = vadd.f32 %v141, %v142
  %v144 = vsel %vm82, %v48, 0.0
  %v145 = vadd.f32 %v143, %v144
  %v146 = vsel %vm82, %v49, 0.0
  %v147 = vadd.f32 %v145, %v146
  %v148 = vsel %vm82, %v50, 0.0
  %v149 = vadd.f32 %v147, %v148
  %v150 = vsel %vm82, %v51, 0.0
  %v151 = vadd.f32 %v149, %v150
  %v152 = vsel %vm82, %v52, 0.0
  %v153 = vadd.f32 %v151, %v152
  %v154 = vsel %vm82, %v53, 0.0
  %v155 = vadd.f32 %v153, %v154
  %v156 = vsel %vm82, %v54, 0.0
  %v157 = vadd.f32 %v155, %v156
  %v158 = vsel %vm82, %v55, 0.0
  %v159 = vadd.f32 %v157, %v158
  %v160 = vsel %vm82, %v56, 0.0
  %v161 = vadd.f32 %v159, %v160
  %v162 = vsel %vm82, %v57, 0.0
  %v163 = vadd.f32 %v161, %v162
  %v164 = vsel %vm82, %v58, 0.0
  %v165 = vadd.f32 %v163, %v164
  %v166 = vsel %vm82, %v59, 0.0
  %v167 = vadd.f32 %v165, %v166
  %v168 = vsel %vm82, %v60, 0.0
  %v169 = vadd.f32 %v167, %v168
  %v170 = vsel %vm82, %v61, 0.0
  %v171 = vadd.f32 %v169, %v170
  %v172 = vsel %vm82, %v62, 0.0
  %v173 = vadd.f32 %v171, %v172
  %v174 = vsel %vm82, %v63, 0.0
  %v175 = vadd.f32 %v173, %v174
  %v176 = vsel %vm82, %v64, 0.0
  %v177 = vadd.f32 %v175, %v176
  %v178 = vsel %vm82, %v65, 0.0
  %v179 = vadd.f32 %v177, %v178
  %v180 = vsel %vm82, %v66, 0.0
  %v181 = vadd.f32 %v179, %v180
  %v182 = vsel %vm82, %v67, 0.0
  %v183 = vadd.f32 %v181, %v182
  %v184 = vsel %vm82, %v68, 0.0
  %v185 = vadd.f32 %v183, %v184
  %v186 = vsel %vm82, %v69, 0.0
  %v187 = vadd.f32 %v185, %v186
  %v188 = vsel %vm82, %v70, 0.0
  %v189 = vadd.f32 %v187, %v188
  %v190 = vsel %vm82, %v71, 0.0
  %v191 = vadd.f32 %v189, %v190
  %v192 = vsel %vm82, %v72, 0.0
  %v193 = vadd.f32 %v191, %v192
  %v194 = vsel %vm82, %v73, 0.0
  %v195 = vadd.f32 %v193, %v194
  %v196 = vsel %vm82, %v74, 0.0
  %v197 = vadd.f32 %v195, %v196
  %v198 = vsel %vm82, %v75, 0.0
  %v199 = vadd.f32 %v197, %v198
  %v200 = vsel %vm82, %v76, 0.0
  %v201 = vadd.f32 %v199, %v200
  %v202 = vsel %vm82, %v77, 0.0
  %v203 = vadd.f32 %v201, %v202
  %v204 = vsel %vm82, %v78, 0.0
  %v205 = vadd.f32 %v203, %v204
  %v206 = vsel %vm82, %v79, 0.0
  %v207 = vadd.f32 %v205, %v206
  %v208 = vsel %vm82, %v80, 0.0
  %v209 = vadd.f32 %v207, %v208
  %v210 = vrot.slane %v209, 4
  %v211 = vadd.f32 %v209, %v210
  %v212 = vrot.slane %v211, 2
  %v213 = vadd.f32 %v211, %v212
  %v214 = vrot.slane %v213, 1
  %v215 = vadd.f32 %v213, %v214
  %v216 = vadd.f32 %v81, %v215
  %vm217 = vcmask 24576
  %218 = vst.msk [vmem:[%s1] sm:$0x1] %vm217, %v216
  %v219 = vld [vmem:[%s2] sm:$0x1]
  %v220 = vmul.f32 %v17, %v17
  %v221 = vmul.f32 %v18, %v18
  %v222 = vmul.f32 %v19, %v19
  %v223 = vmul.f32 %v20, %v20
  %v224 = vmul.f32 %v21, %v21
  %v225 = vmul.f32 %v22, %v22
  %v226 = vmul.f32 %v23, %v23
  %v227 = vmul.f32 %v24, %v24
  %v228 = vmul.f32 %v25, %v25
  %v229 = vmul.f32 %v26, %v26
  %v230 = vmul.f32 %v27, %v27
  %v231 = vmul.f32 %v28, %v28
  %v232 = vmul.f32 %v29, %v29
  %v233 = vmul.f32 %v30, %v30
  %v234 = vmul.f32 %v31, %v31
  %v235 = vmul.f32 %v32, %v32
  %v236 = vmul.f32 %v33, %v33
  %v237 = vmul.f32 %v34, %v34
  %v238 = vmul.f32 %v35, %v35
  %v239 = vmul.f32 %v36, %v36
  %v240 = vmul.f32 %v37, %v37
  %v241 = vmul.f32 %v38, %v38
  %v242 = vmul.f32 %v39, %v39
  %v243 = vmul.f32 %v40, %v40
  %v244 = vmul.f32 %v41, %v41
  %v245 = vmul.f32 %v42, %v42
  %v246 = vmul.f32 %v43, %v43
  %v247 = vmul.f32 %v44, %v44
  %v248 = vmul.f32 %v45, %v45
  %v249 = vmul.f32 %v46, %v46
  %v250 = vmul.f32 %v47, %v47
  %v251 = vmul.f32 %v48, %v48
  %v252 = vmul.f32 %v49, %v49
  %v253 = vmul.f32 %v50, %v50
  %v254 = vmul.f32 %v51, %v51
  %v255 = vmul.f32 %v52, %v52
  %v256 = vmul.f32 %v53, %v53
  %v257 = vmul.f32 %v54, %v54
  %v258 = vmul.f32 %v55, %v55
  %v259 = vmul.f32 %v56, %v56
  %v260 = vmul.f32 %v57, %v57
  %v261 = vmul.f32 %v58, %v58
  %v262 = vmul.f32 %v59, %v59
  %v263 = vmul.f32 %v60, %v60
  %v264 = vmul.f32 %v61, %v61
  %v265 = vmul.f32 %v62, %v62
  %v266 = vmul.f32 %v63, %v63
  %v267 = vmul.f32 %v64, %v64
  %v268 = vmul.f32 %v65, %v65
  %v269 = vmul.f32 %v66, %v66
  %v270 = vmul.f32 %v67, %v67
  %v271 = vmul.f32 %v68, %v68
  %v272 = vmul.f32 %v69, %v69
  %v273 = vmul.f32 %v70, %v70
  %v274 = vmul.f32 %v71, %v71
  %v275 = vmul.f32 %v72, %v72
  %v276 = vmul.f32 %v73, %v73
  %v277 = vmul.f32 %v74, %v74
  %v278 = vmul.f32 %v75, %v75
  %v279 = vmul.f32 %v76, %v76
  %v280 = vmul.f32 %v77, %v77
  %v281 = vmul.f32 %v78, %v78
  %v282 = vmul.f32 %v79, %v79
  %v283 = vmul.f32 %v80, %v80
  %v284 = vsel %vm82, %v220, 0.0
  %v285 = vsel %vm82, %v221, 0.0
  %v286 = vadd.f32 %v284, %v285
  %v287 = vsel %vm82, %v222, 0.0
  %v288 = vadd.f32 %v286, %v287
  %v289 = vsel %vm82, %v223, 0.0
  %v290 = vadd.f32 %v288, %v289
  %v291 = vsel %vm82, %v224, 0.0
  %v292 = vadd.f32 %v290, %v291
  %v293 = vsel %vm82, %v225, 0.0
  %v294 = vadd.f32 %v292, %v293
  %v295 = vsel %vm82, %v226, 0.0
  %v296 = vadd.f32 %v294, %v295
  %v297 = vsel %vm82, %v227, 0.0
  %v298 = vadd.f32 %v296, %v297
  %v299 = vsel %vm82, %v228, 0.0
  %v300 = vadd.f32 %v298, %v299
  %v301 = vsel %vm82, %v229, 0.0
  %v302 = vadd.f32 %v300, %v301
  %v303 = vsel %vm82, %v230, 0.0
  %v304 = vadd.f32 %v302, %v303
  %v305 = vsel %vm82, %v231, 0.0
  %v306 = vadd.f32 %v304, %v305
  %v307 = vsel %vm82, %v232, 0.0
  %v308 = vadd.f32 %v306, %v307
  %v309 = vsel %vm82, %v233, 0.0
  %v310 = vadd.f32 %v308, %v309
  %v311 = vsel %vm82, %v234, 0.0
  %v312 = vadd.f32 %v310, %v311
  %v313 = vsel %vm82, %v235, 0.0
  %v314 = vadd.f32 %v312, %v313
  %v315 = vsel %vm82, %v236, 0.0
  %v316 = vadd.f32 %v314, %v315
  %v317 = vsel %vm82, %v237, 0.0
  %v318 = vadd.f32 %v316, %v317
  %v319 = vsel %vm82, %v238, 0.0
  %v320 = vadd.f32 %v318, %v319
  %v321 = vsel %vm82, %v239, 0.0
  %v322 = vadd.f32 %v320, %v321
  %v323 = vsel %vm82, %v240, 0.0
  %v324 = vadd.f32 %v322, %v323
  %v325 = vsel %vm82, %v241, 0.0
  %v326 = vadd.f32 %v324, %v325
  %v327 = vsel %vm82, %v242, 0.0
  %v328 = vadd.f32 %v326, %v327
  %v329 = vsel %vm82, %v243, 0.0
  %v330 = vadd.f32 %v328, %v329
  %v331 = vsel %vm82, %v244, 0.0
  %v332 = vadd.f32 %v330, %v331
  %v333 = vsel %vm82, %v245, 0.0
  %v334 = vadd.f32 %v332, %v333
  %v335 = vsel %vm82, %v246, 0.0
  %v336 = vadd.f32 %v334, %v335
  %v337 = vsel %vm82, %v247, 0.0
  %v338 = vadd.f32 %v336, %v337
  %v339 = vsel %vm82, %v248, 0.0
  %v340 = vadd.f32 %v338, %v339
  %v341 = vsel %vm82, %v249, 0.0
  %v342 = vadd.f32 %v340, %v341
  %v343 = vsel %vm82, %v250, 0.0
  %v344 = vadd.f32 %v342, %v343
  %v345 = vsel %vm82, %v251, 0.0
  %v346 = vadd.f32 %v344, %v345
  %v347 = vsel %vm82, %v252, 0.0
  %v348 = vadd.f32 %v346, %v347
  %v349 = vsel %vm82, %v253, 0.0
  %v350 = vadd.f32 %v348, %v349
  %v351 = vsel %vm82, %v254, 0.0
  %v352 = vadd.f32 %v350, %v351
  %v353 = vsel %vm82, %v255, 0.0
  %v354 = vadd.f32 %v352, %v353
  %v355 = vsel %vm82, %v256, 0.0
  %v356 = vadd.f32 %v354, %v355
  %v357 = vsel %vm82, %v257, 0.0
  %v358 = vadd.f32 %v356, %v357
  %v359 = vsel %vm82, %v258, 0.0
  %v360 = vadd.f32 %v358, %v359
  %v361 = vsel %vm82, %v259, 0.0
  %v362 = vadd.f32 %v360, %v361
  %v363 = vsel %vm82, %v260, 0.0
  %v364 = vadd.f32 %v362, %v363
  %v365 = vsel %vm82, %v261, 0.0
  %v366 = vadd.f32 %v364, %v365
  %v367 = vsel %vm82, %v262, 0.0
  %v368 = vadd.f32 %v366, %v367
  %v369 = vsel %vm82, %v263, 0.0
  %v370 = vadd.f32 %v368, %v369
  %v371 = vsel %vm82, %v264, 0.0
  %v372 = vadd.f32 %v370, %v371
  %v373 = vsel %vm82, %v265, 0.0
  %v374 = vadd.f32 %v372, %v373
  %v375 = vsel %vm82, %v266, 0.0
  %v376 = vadd.f32 %v374, %v375
  %v377 = vsel %vm82, %v267, 0.0
  %v378 = vadd.f32 %v376, %v377
  %v379 = vsel %vm82, %v268, 0.0
  %v380 = vadd.f32 %v378, %v379
  %v381 = vsel %vm82, %v269, 0.0
  %v382 = vadd.f32 %v380, %v381
  %v383 = vsel %vm82, %v270, 0.0
  %v384 = vadd.f32 %v382, %v383
  %v385 = vsel %vm82, %v271, 0.0
  %v386 = vadd.f32 %v384, %v385
  %v387 = vsel %vm82, %v272, 0.0
  %v388 = vadd.f32 %v386, %v387
  %v389 = vsel %vm82, %v273, 0.0
  %v390 = vadd.f32 %v388, %v389
  %v391 = vsel %vm82, %v274, 0.0
  %v392 = vadd.f32 %v390, %v391
  %v393 = vsel %vm82, %v275, 0.0
  %v394 = vadd.f32 %v392, %v393
  %v395 = vsel %vm82, %v276, 0.0
  %v396 = vadd.f32 %v394, %v395
  %v397 = vsel %vm82, %v277, 0.0
  %v398 = vadd.f32 %v396, %v397
  %v399 = vsel %vm82, %v278, 0.0
  %v400 = vadd.f32 %v398, %v399
  %v401 = vsel %vm82, %v279, 0.0
  %v402 = vadd.f32 %v400, %v401
  %v403 = vsel %vm82, %v280, 0.0
  %v404 = vadd.f32 %v402, %v403
  %v405 = vsel %vm82, %v281, 0.0
  %v406 = vadd.f32 %v404, %v405
  %v407 = vsel %vm82, %v282, 0.0
  %v408 = vadd.f32 %v406, %v407
  %v409 = vsel %vm82, %v283, 0.0
  %v410 = vadd.f32 %v408, %v409
  %v411 = vrot.slane %v410, 4
  %v412 = vadd.f32 %v410, %v411
  %v413 = vrot.slane %v412, 2
  %v414 = vadd.f32 %v412, %v413
  %v415 = vrot.slane %v414, 1
  %v416 = vadd.f32 %v414, %v415
  %v417 = vadd.f32 %v219, %v416
  %418 = vst.msk [vmem:[%s2] sm:$0x1] %vm217, %v417
  // Predicated region
  $region10: #{bn_batch_stats_nhwc.1} parent=0 // pred_check
    _
  $region11: #{bn_batch_stats_nhwc.1} parent=0 // pred_check_branch
    %420 = sbr.rel (0) target = $region13
  $region12: #{bn_batch_stats_nhwc.1} parent=0 // pred_region
    _
  $region13: #{bn_batch_stats_nhwc.1} parent=0 // pred_fallthru
    _
  // Predicated region
  $region14: #{bn_batch_stats_nhwc.1} parent=0 // pred_check
    _
  $region15: #{bn_batch_stats_nhwc.1} parent=0 // pred_check_branch
    %422 = sbr.rel (0) target = $region17
  $region16: #{bn_batch_stats_nhwc.1} parent=0 // pred_region
    _
  $region17: #{bn_batch_stats_nhwc.1} parent=0 // pred_fallthru
    _
  // Predicated region
  $region18: #{bn_batch_stats_nhwc.1} parent=0 // pred_check
    _
  $region19: #{bn_batch_stats_nhwc.1} parent=0 // pred_check_branch
    %424 = sbr.rel (0) target = $region21
  $region20: #{bn_batch_stats_nhwc.1} parent=0 // pred_region
    _
  $region21: #{bn_batch_stats_nhwc.1} parent=0 // pred_fallthru
    _
  // Predicated region
  $region22: #{bn_batch_stats_nhwc.1} parent=0 // pred_check
    _
  $region23: #{bn_batch_stats_nhwc.1} parent=0 // pred_check_branch
    %426 = sbr.rel (0) target = $region25
  $region24: #{bn_batch_stats_nhwc.1} parent=0 // pred_region
    _
  $region25: #{bn_batch_stats_nhwc.1} parent=0 // pred_fallthru
    _

</llo_original>
